<compile_context>
chip_gen: v5e
topology: v5e:2x2
jax: 0.10.0
libtpu: 0.0.40
codegen_flags: <defaults>
</compile_context>

<pallas_src>
import math

import jax
import jax.numpy as jnp
from jax.experimental import pallas as pl
from jax.experimental.pallas import tpu as pltpu


def _drop_path_kernel(scale_ref, x_ref, o_ref):
    """out = x * per_row_scale  (per-sample stochastic-depth scaling).

    scale_ref: VMEM (R, 1)     per-row scale, resident across the whole grid
    x_ref:     VMEM (R, TILE)  lane-dense feature tile
    o_ref:     VMEM (R, TILE)
    """
    o_ref[...] = x_ref[...] * scale_ref[...]


def _sublane_multiple(dtype):
    itemsize = jnp.dtype(dtype).itemsize
    if itemsize >= 4:
        return 8
    if itemsize == 2:
        return 16
    return 32


def _pick_fold(b, lc, sub):
    """Factor G folded out of the feature dim so rows = B*G fills sublanes."""
    if b % sub == 0:
        return 1
    g = sub // math.gcd(b, sub)
    if lc % g == 0:
        return g
    return 1  # fallback: correct, just under-utilizes sublanes


def _pick_tile(l_pad, rows, itemsize, sub, target_block_bytes=4 << 20):
    """Largest multiple-of-128 divisor of l_pad within a ~4 MiB block budget,
    keeping >= 2 grid steps when possible (so both v7x TensorCores get work)."""
    rows_pad = max(sub, ((rows + sub - 1) // sub) * sub)
    cap = (target_block_bytes // (rows_pad * itemsize)) // 128 * 128
    cap = max(128, cap)
    upper = min(cap, l_pad)
    if l_pad >= 256 and upper >= l_pad:
        upper = max(128, (l_pad // 2) // 128 * 128)
    for t in range(upper, 127, -128):
        if l_pad % t == 0:
            return t
    return 128  # 128 always divides l_pad (l_pad is a multiple of 128)


def drop_path(x, drop_prob: float = 0.0, training: bool = False, *,
              key=None, seed: int = 0):
    """Pallas DropPath. x: (B, ...); per-sample drop with prob `drop_prob`."""
    if drop_prob == 0.0 or not training:
        return x

    keep_prob = 1.0 - float(drop_prob)
    orig_shape = x.shape
    b = orig_shape[0]
    lc = 1
    for d in orig_shape[1:]:
        lc *= d

    # --- per-sample Bernoulli scale, computed ONCE outside the kernel -------
    # torch: floor(keep_prob + u) == 1  <=>  keep_prob + u >= 1
    if key is None:
        key = jax.random.PRNGKey(seed)
    u = jax.random.uniform(key, (b,), dtype=jnp.float32)
    keep = (keep_prob + u) >= 1.0
    scale = jnp.where(keep, jnp.float32(1.0 / keep_prob), jnp.float32(0.0))

    # --- fold features into rows so sublanes are fully used when B is small -
    sub = _sublane_multiple(x.dtype)
    g = _pick_fold(b, lc, sub)
    rows = b * g
    feat = lc // g
    x2 = x.reshape(rows, feat)
    scale_rows = jnp.repeat(scale, g).reshape(rows, 1).astype(x.dtype)

    # --- pad lanes to a multiple of 128 for unmasked vld/vst ----------------
    feat_pad = ((feat + 127) // 128) * 128
    if feat_pad != feat:
        x2 = jnp.pad(x2, ((0, 0), (0, feat_pad - feat)))

    itemsize = jnp.dtype(x.dtype).itemsize
    tile = _pick_tile(feat_pad, rows, itemsize, sub)
    num_tiles = feat_pad // tile

    rows_pad = max(sub, ((rows + sub - 1) // sub) * sub)
    block_bytes = rows_pad * tile * itemsize
    # input + output, double-buffered, + resident scale + slack
    vmem_need = 4 * block_bytes + rows_pad * 128 * 4 + (2 << 20)
    vmem_limit = int(min(max(vmem_need, 32 << 20), 48 << 20))

    out2 = pl.pallas_call(
        _drop_path_kernel,
        out_shape=jax.ShapeDtypeStruct((rows, feat_pad), x.dtype),
        grid=(num_tiles,),
        in_specs=[
            pl.BlockSpec((rows, 1), lambda i: (0, 0)),      # resident scale
            pl.BlockSpec((rows, tile), lambda i: (0, i)),   # lane-dense tiles
        ],
        out_specs=pl.BlockSpec((rows, tile), lambda i: (0, i)),
        compiler_params=pltpu.CompilerParams(
            dimension_semantics=("parallel",),
            vmem_limit_bytes=vmem_limit),
        cost_estimate=pl.CostEstimate(
            flops=rows * feat_pad,
            transcendentals=0,
            bytes_accessed=(2 * rows * feat_pad + rows) * itemsize),
    )(scale_rows, x2)

    if feat_pad != feat:
        out2 = out2[:, :feat]
    return out2.reshape(orig_shape)


if __name__ == "__main__":
    # Small shape consistent with how DropPath is used in the HAT blocks.
    B, C, H, W = 2, 4, 16, 16
    drop_prob = 0.3
    keep_prob = 1.0 - drop_prob
    seed = 0

    key = jax.random.PRNGKey(0)
    x = jax.random.normal(key, (B, C, H, W), dtype=jnp.float32)

    # Identity paths (eval mode / drop_prob == 0), like the PyTorch module.
    out_eval = drop_path(x, drop_prob, training=False)
    assert out_eval is x or bool(jnp.array_equal(out_eval, x))
    out_zero = drop_path(x, 0.0, training=True)
    assert out_zero is x or bool(jnp.array_equal(out_zero, x))

    # Training path: Pallas kernel.
    out_train = jax.block_until_ready(
        drop_path(x, drop_prob, training=True, seed=seed))
    assert out_train.shape == x.shape and out_train.dtype == x.dtype

    # Reference: same per-sample draw, pure-JAX broadcast multiply.
    u = jax.random.uniform(jax.random.PRNGKey(seed), (B,), dtype=jnp.float32)
    keep = (keep_prob + u) >= 1.0
    ref_scale = jnp.where(keep, 1.0 / keep_prob, 0.0).reshape(B, 1, 1, 1)
    ref = x * ref_scale
    assert bool(jnp.allclose(out_train, ref, atol=1e-6, rtol=1e-6))

    # Structural check: each sample fully kept (scaled by 1/keep_prob) or
    # fully dropped (all zeros) — mask consistent across all features.
    for bi in range(B):
        row = out_train[bi]
        kept = bool(jnp.allclose(row, x[bi] / keep_prob, atol=1e-5, rtol=1e-5))
        dropped = bool(jnp.allclose(row, jnp.zeros_like(row), atol=0.0))
        assert kept or dropped, f"sample {bi}: invalid drop-path output"

    print("KERNEL_OK")
</pallas_src>

<mosaic_0001>
module attributes {stable_mosaic.version = 11 : i64} {
  func.func @_drop_path_kernel(%arg0: i32, %arg1: memref<8x1xf32, #tpu.memory_space<vmem>>, %arg2: memref<8x128xf32, #tpu.memory_space<vmem>>, %arg3: memref<8x128xf32, #tpu.memory_space<vmem>>) attributes {dimension_semantics = [#tpu.dimension_semantics<parallel>], iteration_bounds = array<i64: 2>, scalar_prefetch = 0 : i64, scratch_operands = 0 : i64, tpu.core_type = #tpu.core_type<tc>, window_params = [{pipeline_mode = #tpu.pipeline_mode<synchronous>, transform_indices = @transform_0, window_bounds = array<i64: 8, 1>}, {transform_indices = @transform_1, window_bounds = array<i64: 8, 128>}, {transform_indices = @transform_2, window_bounds = array<i64: 8, 128>}]} {
    %c0 = arith.constant 0 : index
    %c0_0 = arith.constant 0 : index
    %0 = vector.load %arg2[%c0, %c0_0] : memref<8x128xf32, #tpu.memory_space<vmem>>, vector<8x128xf32>
    %c0_1 = arith.constant 0 : index
    %c0_2 = arith.constant 0 : index
    %1 = vector.load %arg1[%c0_1, %c0_2] : memref<8x1xf32, #tpu.memory_space<vmem>>, vector<8x1xf32>
    %2 = vector.broadcast %1 : vector<8x1xf32> to vector<8x128xf32>
    %3 = arith.mulf %0, %2 : vector<8x128xf32>
    %c0_3 = arith.constant 0 : index
    %c0_4 = arith.constant 0 : index
    %4 = vector.load %arg3[%c0_3, %c0_4] : memref<8x128xf32, #tpu.memory_space<vmem>>, vector<8x128xf32>
    tpu.vector_store %arg3[%c0_3, %c0_4], %3 {strides = array<i32>} : memref<8x128xf32, #tpu.memory_space<vmem>>, vector<8x128xf32>,
    return
  }
  func.func @transform_0(%arg0: i32) -> (i32, i32) {
    %c0_i32 = arith.constant 0 : i32
    %c0_i32_0 = arith.constant 0 : i32
    %c0_i32_1 = arith.constant 0 : i32
    return %c0_i32, %c0_i32_0 : i32, i32
  }
  func.func @transform_1(%arg0: i32) -> (i32, i32) {
    %c0_i32 = arith.constant 0 : i32
    %c0_i32_0 = arith.constant 0 : i32
    return %c0_i32, %arg0 : i32, i32
  }
  func.func @transform_2(%arg0: i32) -> (i32, i32) {
    %c0_i32 = arith.constant 0 : i32
    %c0_i32_0 = arith.constant 0 : i32
    return %c0_i32, %arg0 : i32, i32
  }
}

</mosaic_0001>

<llo_original>
// kernel: tpu_custom_call.1
$region0: #{tpu_custom_call.1}
  #allocation0 [shape = 'u32[]', space=smem, size = 0x4, offset = 0x4, fixed_abs, tag = 'smem constant byte address 0x4 - core index']
  #allocation1 [shape = 'u32[72,128]{1,0:T(1,128)}', space=vmem, size = 0x9000, scoped, tag = 'internal scratch']
  %s0 = inlined_call_operand.vmem [shape: f32[8,1], index: 0, kind: input, shape index: {}]
  %s1 = inlined_call_operand.hbm [shape: f32[8,256], index: 1, kind: input, shape index: {}]
  %s2 = inlined_call_operand.hbm [shape: f32[8,256], index: 2, kind: output, shape index: {}]
  %s3 = sld [smem:[#allocation0]]
  $region45: #{tpu_custom_call.1} parent=0
    _
  %s5 = ssub.s32 1, %s3
  %s6 = scalar_select 0, %s5, %s3
  $region1: #{tpu_custom_call.1} parent=0
    #allocation2 [shape = 'u8[8192]{0}', space=vmem, size = 0x2000, scoped, tag = 'input window, operand 1']
    #allocation3 [shape = 's32[2]{0}', space=sflag, size = 0x8, scoped, tag = 'scoped memory for tpu_custom_call.1']
    #allocation4 [shape = 's32[2]{0}', space=sflag, size = 0x8, scoped, tag = 'scoped memory for tpu_custom_call.1']
    #allocation5 [shape = 'u8[8192]{0}', space=vmem, size = 0x2000, scoped, tag = 'output window, operand 0']
    %7 = vsyncpa [#allocation3], 0
    %s8 = scalar_lea.sflag [#allocation3], 1
    %9 = vsyncpa %s8, 0
    %10 = vsyncpa [#allocation4], 0
    %s11 = scalar_lea.sflag [#allocation4], 1
    %12 = vsyncpa %s11, 0
    loop: start=0, step=1, limit=4
    $region2: #{tpu_custom_call.1} parent=1 // loop_pre_header
      _
    $region3: #{tpu_custom_call.1} parent=1 // loop_header
      %s14 = sphi 0, %s18
      %p15 = scmp.ge.s32.totalorder %s14, 4
      %s22 = sphi 0, %s22
      %s24 = sphi 0, %s22
      %s25 = sphi 0, %s24
      %s39 = sphi 0, %s25
      %s45 = sphi 0, %s47
      %s48 = sphi 0, %s45
      %s49 = sphi 0, %s48
      %s65 = sphi 0, %s49
      %s71 = sphi 0, %s73
      %s74 = sphi 0, %s71
      %s75 = sphi 0, %s74
      %s91 = sphi 0, %s75
    $region4: #{tpu_custom_call.1} parent=1 // loop_header_branch
      %17 = sbr.rel (%p15) target = $region8
    $region5: #{tpu_custom_call.1} parent=1 // loop_body
      %s19 = ssub.s32 %s14, 1
      %s20 = ssub.s32 %s14, 2
      %s21 = sadd.s32 %s14, 1
      %s23 = sadd.s32 %s22, 1
      %p26 = scmp.eq.s32.totalorder %s14, 1
      %p27 = scmp.ne.s32.totalorder %s22, %s24
      %p28 = scmp.eq.s32.totalorder %s14, 0
      %p29 = por %p27, %p28
      %p30 = scmp.ne.s32.totalorder %s22, %s24
      %p31 = scmp.eq.s32.totalorder %s19, 1
      %p32 = por %p30, %p31
      %p33 = scmp.ne.s32.totalorder %s24, %s25
      %p34 = scmp.eq.s32.totalorder %s19, 0
      %p35 = por %p33, %p34
      %p36 = scmp.ne.s32.totalorder %s24, %s25
      %p37 = scmp.eq.s32.totalorder %s20, 1
      %p38 = por %p36, %p37
      %p40 = scmp.ne.s32.totalorder %s25, %s39
      %p41 = scmp.eq.s32.totalorder %s20, 0
      %p42 = por %p40, %p41
      %s43 = ssub.s32 %s14, %s21
      %p44 = scmp.eq.s32.totalorder %s43, 0
      %s46 = sadd.s32 %s45, 1
      %s47 = scalar_select %p44, %s45, %s46
      %p50 = pneg %p44
      %p51 = scmp.eq.s32.totalorder %s14, 1
      %p52 = por %p50, %p51
      %p53 = scmp.ne.s32.totalorder %s45, %s48
      %p54 = scmp.eq.s32.totalorder %s14, 0
      %p55 = por %p53, %p54
      %p56 = scmp.ne.s32.totalorder %s45, %s48
      %p57 = scmp.eq.s32.totalorder %s19, 1
      %p58 = por %p56, %p57
      %p59 = scmp.ne.s32.totalorder %s48, %s49
      %p60 = scmp.eq.s32.totalorder %s19, 0
      %p61 = por %p59, %p60
      %p62 = scmp.ne.s32.totalorder %s48, %s49
      %p63 = scmp.eq.s32.totalorder %s20, 1
      %p64 = por %p62, %p63
      %p66 = scmp.ne.s32.totalorder %s49, %s65
      %p67 = scmp.eq.s32.totalorder %s20, 0
      %p68 = por %p66, %p67
      %s69 = ssub.s32 %s14, %s21
      %p70 = scmp.eq.s32.totalorder %s69, 0
      %s72 = sadd.s32 %s71, 1
      %s73 = scalar_select %p70, %s71, %s72
      %p76 = pneg %p70
      %p77 = scmp.eq.s32.totalorder %s14, 1
      %p78 = por %p76, %p77
      %p79 = scmp.ne.s32.totalorder %s71, %s74
      %p80 = scmp.eq.s32.totalorder %s14, 0
      %p81 = por %p79, %p80
      %p82 = scmp.ne.s32.totalorder %s71, %s74
      %p83 = scmp.eq.s32.totalorder %s19, 1
      %p84 = por %p82, %p83
      %p85 = scmp.ne.s32.totalorder %s74, %s75
      %p86 = scmp.eq.s32.totalorder %s19, 0
      %p87 = por %p85, %p86
      %p88 = scmp.ne.s32.totalorder %s74, %s75
      %p89 = scmp.eq.s32.totalorder %s20, 1
      %p90 = por %p88, %p89
      %p92 = scmp.ne.s32.totalorder %s75, %s91
      %p93 = scmp.eq.s32.totalorder %s20, 0
      %p94 = por %p92, %p93
      %p95 = scmp.le.s32.totalorder 1, %s14
      %p96 = scmp.lt.s32.totalorder %s14, 3
      %p97 = pnand %p95, %p96
      %p98 = pneg %p97
      // Predicated region
      $region9: #{tpu_custom_call.1} parent=5 // pred_check
        _
      $region10: #{tpu_custom_call.1} parent=5 // pred_check_branch
        %100 = sbr.rel (%p97) target = $region12
      $region11: #{tpu_custom_call.1} parent=5 // pred_region
        %s101 = ssub.s32 %s14, 1
        // Predicated region
        $region13: #{tpu_custom_call.1} parent=11 // pred_check
          %p102 = pneg %p35
        $region14: #{tpu_custom_call.1} parent=11 // pred_check_branch
          %104 = sbr.rel (%p102) target = $region16
        $region15: #{tpu_custom_call.1} parent=11 // pred_region
          _
        $region16: #{tpu_custom_call.1} parent=11 // pred_fallthru
          _
      $region12: #{tpu_custom_call.1} parent=5 // pred_fallthru
        _
      %p105 = scmp.lt.s32.totalorder %s14, 2
      // Predicated region
      $region17: #{tpu_custom_call.1} parent=5 // pred_check
        %p106 = pneg %p105
      $region18: #{tpu_custom_call.1} parent=5 // pred_check_branch
        %108 = sbr.rel (%p106) target = $region20
      $region19: #{tpu_custom_call.1} parent=5 // pred_region
        // Predicated region
        $region21: #{tpu_custom_call.1} parent=19 // pred_check
          %p109 = pneg %p55
        $region22: #{tpu_custom_call.1} parent=19 // pred_check_branch
          %111 = sbr.rel (%p109) target = $region24
        $region23: #{tpu_custom_call.1} parent=19 // pred_region
          %s112 = sand.u32 %s45, 1
          %s113 = scalar_lea.sflag [#allocation3], %s112
          %s114 = sand.u32 %s45, 1
          %s115 = smul.addr %s114, 8
          %s116 = scalar_lea.vmem [#allocation2], %s115
          %118 = vsyncadd %s113, 0
          %s119 = smul.addr %s14, 8
          %s120 = scalar_lea.hbm %s1, %s119
          %s122 = sshll.u32 %s120, 4
          %s123 = int_to_ptr.hbm [resolvable:$true] %s122
          %s124 = sshll.u32 %s116, 4
          %s125 = int_to_ptr.vmem [resolvable:$true] %s124
          %127 = dma.hbm_to_vmem [thread:$0]  %s123, 128, %s125, %s113
        $region24: #{tpu_custom_call.1} parent=19 // pred_fallthru
          _
      $region20: #{tpu_custom_call.1} parent=5 // pred_fallthru
        _
      %p128 = scmp.le.s32.totalorder 1, %s14
      %p129 = scmp.lt.s32.totalorder %s14, 3
      %p130 = pnand %p128, %p129
      %p131 = pneg %p130
      // Predicated region
      $region25: #{tpu_custom_call.1} parent=5 // pred_check
        _
      $region26: #{tpu_custom_call.1} parent=5 // pred_check_branch
        %133 = sbr.rel (%p130) target = $region28
      $region27: #{tpu_custom_call.1} parent=5 // pred_region
        %s134 = ssub.s32 %s14, 1
        %s135 = sand.u32 %s48, 1
        %s136 = scalar_lea.sflag [#allocation3], %s135
        %s137 = sand.u32 %s48, 1
        %s138 = smul.addr %s137, 8
        %s139 = scalar_lea.vmem [#allocation2], %s138
        // Predicated region
        $region29: #{tpu_custom_call.1} parent=27 // pred_check
          %p140 = pneg %p61
        $region30: #{tpu_custom_call.1} parent=27 // pred_check_branch
          %142 = sbr.rel (%p140) target = $region32
        $region31: #{tpu_custom_call.1} parent=27 // pred_region
          %144 = dma.done %s136, 128
        $region32: #{tpu_custom_call.1} parent=27 // pred_fallthru
          _
        %p145 = pneg %p35
        %p146 = pneg %p32
        %s147 = sand.u32 %s48, 1
        %s148 = scalar_lea.sflag [#allocation3], %s147
        %s149 = sand.u32 %s48, 1
        %s150 = smul.addr %s149, 8
        %s151 = scalar_lea.vmem [#allocation2], %s150
        %p152 = pneg %p61
        %p153 = pneg %p58
        %p154 = pneg %p87
        %p155 = pneg %p84
        %s156 = sand.u32 %s74, 1
        %s157 = scalar_lea.sflag [#allocation4], %s156
        %s158 = sand.u32 %s74, 1
        %s159 = smul.addr %s158, 8
        %s160 = scalar_lea.vmem [#allocation5], %s159
        %v161 = vld [vmem:[%s139] sm:$0xff]
        %v162 = vld [vmem:[%s0] sm:$0xff]
        %164 = vset.pattern.permute.xlu0 0
        %165 = vperm.xlu0 %164, %v162
        %v166 = vpop.permute.xlu0 %165
        %v168 = vmul.f32 %v161, %v166
        %169 = vst [vmem:[%s160] sm:$0xff] %v168
        %s170 = sand.u32 %s74, 1
        %s171 = scalar_lea.sflag [#allocation4], %s170
        %s172 = sand.u32 %s74, 1
        %s173 = smul.addr %s172, 8
        %s174 = scalar_lea.vmem [#allocation5], %s173
        // Predicated region
        $region33: #{tpu_custom_call.1} parent=27 // pred_check
          %p175 = pneg %p84
        $region34: #{tpu_custom_call.1} parent=27 // pred_check_branch
          %177 = sbr.rel (%p175) target = $region36
        $region35: #{tpu_custom_call.1} parent=27 // pred_region
          %179 = vsyncadd %s171, 0
          %s180 = smul.addr %s19, 8
          %s181 = scalar_lea.hbm %s2, %s180
          %s183 = sshll.u32 %s174, 4
          %s184 = int_to_ptr.vmem [resolvable:$true] %s183
          %s185 = sshll.u32 %s181, 4
          %s186 = int_to_ptr.hbm [resolvable:$true] %s185
          %188 = dma.vmem_to_hbm [thread:$0]  %s184, 128, %s186, %s171
        $region36: #{tpu_custom_call.1} parent=27 // pred_fallthru
          _
      $region28: #{tpu_custom_call.1} parent=5 // pred_fallthru
        _
      %p189 = scmp.le.s32.totalorder 2, %s14
      // Predicated region
      $region37: #{tpu_custom_call.1} parent=5 // pred_check
        %p190 = pneg %p189
      $region38: #{tpu_custom_call.1} parent=5 // pred_check_branch
        %192 = sbr.rel (%p190) target = $region40
      $region39: #{tpu_custom_call.1} parent=5 // pred_region
        %s193 = ssub.s32 %s14, 2
        // Predicated region
        $region41: #{tpu_custom_call.1} parent=39 // pred_check
          %p194 = pneg %p90
        $region42: #{tpu_custom_call.1} parent=39 // pred_check_branch
          %196 = sbr.rel (%p194) target = $region44
        $region43: #{tpu_custom_call.1} parent=39 // pred_region
          %s197 = sand.u32 %s75, 1
          %s198 = scalar_lea.sflag [#allocation4], %s197
          %s199 = sand.u32 %s75, 1
          %s200 = smul.addr %s199, 8
          %s201 = scalar_lea.vmem [#allocation5], %s200
          %203 = dma.done %s198, 128
        $region44: #{tpu_custom_call.1} parent=39 // pred_fallthru
          _
      $region40: #{tpu_custom_call.1} parent=5 // pred_fallthru
        _
    $region6: #{tpu_custom_call.1} parent=1 // loop_footer
      %s18 = sadd.s32 1, %s14
    $region7: #{tpu_custom_call.1} parent=1 // loop_footer_branch
      %13 = sbr.rel target = $region3
    $region8: #{tpu_custom_call.1} parent=1 // loop_exit
      _
    %204 = vsyncpa [#allocation3], 1
    %s205 = scalar_lea.sflag [#allocation3], 1
    %206 = vsyncpa %s205, 1
    %207 = vsyncpa [#allocation4], 1
    %s208 = scalar_lea.sflag [#allocation4], 1
    %209 = vsyncpa %s208, 1

</llo_original>
